<compile_context>
chip_gen: v6e
topology: v6e:2x2x1
jax: 0.10.0
libtpu: 0.0.40
codegen_flags: <defaults>
</compile_context>

<pallas_src>
import jax
import jax.numpy as jnp
from jax.experimental import pallas as pl
from jax.experimental.pallas import tpu as pltpu

_LANE = 128


def _round_up(x, m):
    return ((x + m - 1) // m) * m


def classifier_kernel(x_ref, wt_ref, b_ref, o_ref):
    # tanh in f32 on the EUP (v5e has no bf16 vector path); feed the MXU
    # operands in the weight's storage dtype so bf16 weights hit the fast
    # bf16 MXU path, always accumulating in f32.
    x = jnp.tanh(x_ref[...].astype(jnp.float32)).astype(wt_ref.dtype)
    y = jnp.dot(x, wt_ref[...], preferred_element_type=jnp.float32)
    o_ref[...] = (y + b_ref[...].astype(jnp.float32)).astype(o_ref.dtype)


def prepare_classifier_params(weight, bias):
    """One-time parameter prep (do this at init, NOT per forward call).

    weight: [C, H] (PyTorch nn.Linear layout), bias: [C].
    Returns (wt_pad [H, Cp], b_pad [1, Cp]) with Cp a multiple of 128 so
    output stores are lane-dense. The contraction axis H is NOT padded:
    Mosaic zero-pads K internally for the MXU, so padding it here would only
    inflate HBM traffic and resident-weight VMEM.
    """
    C, H = weight.shape
    Cp = _round_up(C, _LANE)
    wt_pad = jnp.zeros((H, Cp), weight.dtype).at[:, :C].set(weight.T)
    b_pad = jnp.zeros((1, Cp), bias.dtype).at[0, :C].set(bias)
    return wt_pad, b_pad


def classifier_forward(feature, wt_pad, b_pad, num_class, *, tm=1024):
    """feature: [B, H]; wt_pad/b_pad from prepare_classifier_params."""
    B, H = feature.shape
    Hw, Cp = wt_pad.shape
    assert Hw == H, "weight/feature hidden-size mismatch"

    itemsize = jnp.dtype(feature.dtype).itemsize
    w_itemsize = jnp.dtype(wt_pad.dtype).itemsize
    # Sublane packing: 8 rows for 32-bit, 16 for bf16, 32 for int8/fp8.
    sub = max(8, 32 // max(itemsize, 1))

    # Batch tile: dtype-aware sublane multiple; no padded copy of the input.
    tm = min(tm, _round_up(B, sub))
    # Prefer >= 2 grid steps so the "parallel" batch axis can shard across
    # both TensorCores on v7x (neutral on single-core v5e/v6e).
    if B > sub:
        tm = min(tm, _round_up(pl.cdiv(B, 2), sub))
    grid = (pl.cdiv(B, tm),)

    out = pl.pallas_call(
        classifier_kernel,
        out_shape=jax.ShapeDtypeStruct((B, Cp), feature.dtype),
        grid_spec=pltpu.PrefetchScalarGridSpec(
            num_scalar_prefetch=0,
            grid=grid,
            in_specs=[
                # Streamed batch tile; ragged last block is safe: no cross-row
                # reduction, and out-of-range output rows are masked.
                pl.BlockSpec((tm, H), lambda i: (i, 0)),
                # Weight/bias: constant block index -> resident in VMEM,
                # single-buffered (double-buffering a constant wastes VMEM).
                pl.BlockSpec((H, Cp), lambda i: (0, 0),
                             pipeline_mode=pl.Buffered(1)),
                pl.BlockSpec((1, Cp), lambda i: (0, 0),
                             pipeline_mode=pl.Buffered(1)),
            ],
            out_specs=pl.BlockSpec((tm, Cp), lambda i: (i, 0)),
        ),
        compiler_params=pltpu.CompilerParams(
            dimension_semantics=("parallel",),          # 2x on v7x megacore
            vmem_limit_bytes=32 * 1024 * 1024,          # safe on v5e/v6e/v7x
        ),
        cost_estimate=pl.CostEstimate(
            flops=2 * B * H * Cp,
            transcendentals=B * H,
            bytes_accessed=(B * H * itemsize
                            + H * Cp * w_itemsize
                            + Cp * jnp.dtype(b_pad.dtype).itemsize
                            + B * Cp * itemsize),
        ),
    )(feature, wt_pad, b_pad)

    # TODO(synk): for vocab-scale num_class (esp. on v7x), add a second
    # "parallel" grid axis over C (weight block (H, tn), tn ~ 512-2048) and
    # consume the padded [B, Cp] logits directly downstream (mask at the
    # loss) instead of paying this slice copy. Negligible at C=4.
    return out[:, :num_class]


if __name__ == "__main__":
    batch, hidden_size, num_class = 8, 32, 4

    key = jax.random.PRNGKey(0)
    k_feat, k_w = jax.random.split(key)

    # Deterministic parameter init matching Classifier.init_weights():
    # weight ~ U(-0.02, 0.02), bias = 0.
    initrange = 0.02
    weight = jax.random.uniform(
        k_w, (num_class, hidden_size), jnp.float32,
        minval=-initrange, maxval=initrange)
    bias = jnp.zeros((num_class,), jnp.float32)

    feature = jax.random.normal(k_feat, (batch, hidden_size), jnp.float32)

    # One-time parameter preparation (outside the hot path).
    wt_pad, b_pad = prepare_classifier_params(weight, bias)

    out = classifier_forward(feature, wt_pad, b_pad, num_class)
    jax.block_until_ready(out)

    # Reference check (plain JAX)
    ref = jnp.tanh(feature) @ weight.T + bias
    assert out.shape == (batch, num_class)
    assert jnp.allclose(out, ref, atol=1e-5, rtol=1e-5)

    print("KERNEL_OK")
</pallas_src>

<mosaic_0001>
module attributes {stable_mosaic.version = 11 : i64} {
  func.func @classifier_kernel(%arg0: i32, %arg1: memref<8x32xf32, #tpu.memory_space<vmem>>, %arg2: memref<32x128xf32, #tpu.memory_space<vmem>>, %arg3: memref<1x128xf32, #tpu.memory_space<vmem>>, %arg4: memref<8x128xf32, #tpu.memory_space<vmem>>) attributes {dimension_semantics = [#tpu.dimension_semantics<parallel>], iteration_bounds = array<i64: 1>, scalar_prefetch = 0 : i64, scratch_operands = 0 : i64, tpu.core_type = #tpu.core_type<tc>, window_params = [{transform_indices = @transform_0, window_bounds = array<i64: 8, 32>}, {pipeline_mode = #tpu.pipeline_mode<synchronous>, transform_indices = @transform_1, window_bounds = array<i64: 32, 128>}, {pipeline_mode = #tpu.pipeline_mode<synchronous>, transform_indices = @transform_2, window_bounds = array<i64: 1, 128>}, {transform_indices = @transform_3, window_bounds = array<i64: 8, 128>}]} {
    %c0 = arith.constant 0 : index
    %c0_0 = arith.constant 0 : index
    %0 = vector.load %arg1[%c0, %c0_0] : memref<8x32xf32, #tpu.memory_space<vmem>>, vector<8x32xf32>
    %1 = math.tanh %0 : vector<8x32xf32>
    %c0_1 = arith.constant 0 : index
    %c0_2 = arith.constant 0 : index
    %2 = vector.load %arg2[%c0_1, %c0_2] : memref<32x128xf32, #tpu.memory_space<vmem>>, vector<32x128xf32>
    %cst = arith.constant dense<0.000000e+00> : vector<8x128xf32>
    %3 = tpu.matmul %1, %2, %cst {dimension_numbers = #tpu.dot_dimension_numbers<[1], [0], [0], [1], [0, 0, 1, 1], [], []>} : vector<8x32xf32>, vector<32x128xf32>, vector<8x128xf32> -> vector<8x128xf32>
    %c0_3 = arith.constant 0 : index
    %c0_4 = arith.constant 0 : index
    %4 = vector.load %arg3[%c0_3, %c0_4] : memref<1x128xf32, #tpu.memory_space<vmem>>, vector<1x128xf32>
    %5 = vector.broadcast %4 : vector<1x128xf32> to vector<8x128xf32>
    %6 = arith.addf %3, %5 : vector<8x128xf32>
    %c0_5 = arith.constant 0 : index
    %c0_6 = arith.constant 0 : index
    %7 = vector.load %arg4[%c0_5, %c0_6] : memref<8x128xf32, #tpu.memory_space<vmem>>, vector<8x128xf32>
    tpu.vector_store %arg4[%c0_5, %c0_6], %6 {strides = array<i32>} : memref<8x128xf32, #tpu.memory_space<vmem>>, vector<8x128xf32>,
    return
  }
  func.func @transform_0(%arg0: i32) -> (i32, i32) {
    %c0_i32 = arith.constant 0 : i32
    %c0_i32_0 = arith.constant 0 : i32
    return %arg0, %c0_i32 : i32, i32
  }
  func.func @transform_1(%arg0: i32) -> (i32, i32) {
    %c0_i32 = arith.constant 0 : i32
    %c0_i32_0 = arith.constant 0 : i32
    %c0_i32_1 = arith.constant 0 : i32
    return %c0_i32, %c0_i32_0 : i32, i32
  }
  func.func @transform_2(%arg0: i32) -> (i32, i32) {
    %c0_i32 = arith.constant 0 : i32
    %c0_i32_0 = arith.constant 0 : i32
    %c0_i32_1 = arith.constant 0 : i32
    return %c0_i32, %c0_i32_0 : i32, i32
  }
  func.func @transform_3(%arg0: i32) -> (i32, i32) {
    %c0_i32 = arith.constant 0 : i32
    %c0_i32_0 = arith.constant 0 : i32
    return %arg0, %c0_i32 : i32, i32
  }
}

</mosaic_0001>

<llo_original>
// kernel: tpu_custom_call.1
$region0: #{tpu_custom_call.1}
  #allocation0 [shape = 'u32[]', space=smem, size = 0x4, offset = 0x4, fixed_abs, tag = 'smem constant byte address 0x4 - core index']
  #allocation1 [shape = 'u32[144,128]{1,0:T(1,128)}', space=vmem, size = 0x12000, scoped, tag = 'internal scratch']
  %s0 = inlined_call_operand.hbm [shape: f32[8,32], index: 0, kind: input, shape index: {}]
  %s1 = inlined_call_operand.hbm [shape: f32[32,128], index: 1, kind: input, shape index: {}]
  %s2 = inlined_call_operand.vmem [shape: f32[1,128], index: 2, kind: input, shape index: {}]
  %s3 = inlined_call_operand.hbm [shape: f32[8,128], index: 3, kind: output, shape index: {}]
  %s4 = sld [smem:[#allocation0]]
  $region30: #{tpu_custom_call.1} parent=0
    _
  %s6 = ssub.s32 1, %s4
  %s7 = scalar_select 0, %s6, %s4
  $region1: #{tpu_custom_call.1} parent=0
    #allocation2 [shape = 'u8[4096]{0}', space=vmem, size = 0x1000, scoped, tag = 'input window, operand 0, single buffered']
    #allocation3 [shape = 's32[1]{0}', space=sflag, size = 0x4, scoped, tag = 'scoped memory for tpu_custom_call.1']
    #allocation4 [shape = 's32[1]{0}', space=sflag, size = 0x4, scoped, tag = 'scoped memory for tpu_custom_call.1']
    #allocation5 [shape = 'u8[16384]{0}', space=vmem, size = 0x4000, scoped, tag = 'input window, operand 1, single buffered']
    #allocation6 [shape = 's32[1]{0}', space=sflag, size = 0x4, scoped, tag = 'scoped memory for tpu_custom_call.1']
    #allocation7 [shape = 'u8[4096]{0}', space=vmem, size = 0x1000, scoped, tag = 'output window, operand 0, single buffered']
    %8 = vsyncpa [#allocation3], 0
    %9 = vsyncpa [#allocation6], 0
    %10 = vsyncpa [#allocation4], 0
    // Predicated region
    $region2: #{tpu_custom_call.1} parent=1 // pred_check
      _
    $region3: #{tpu_custom_call.1} parent=1 // pred_check_branch
      %12 = sbr.rel (0) target = $region5
    $region4: #{tpu_custom_call.1} parent=1 // pred_region
      %s14 = ssub.s32 128, 128
      %15 = vsyncadd [#allocation3], %s14
      %s17 = sshll.u32 [#allocation2], 4
      %s18 = int_to_ptr.vmem [resolvable:$true] %s17
      %20 = dma.hbm_to_vmem [thread:$0]  %s0, 128, %s18, [#allocation3]
    $region5: #{tpu_custom_call.1} parent=1 // pred_fallthru
      _
    // Predicated region
    $region6: #{tpu_custom_call.1} parent=1 // pred_check
      _
    $region7: #{tpu_custom_call.1} parent=1 // pred_check_branch
      %22 = sbr.rel (0) target = $region9
    $region8: #{tpu_custom_call.1} parent=1 // pred_region
      %s24 = ssub.s32 512, 512
      %25 = vsyncadd [#allocation6], %s24
      %s26 = sshll.u32 [#allocation5], 4
      %s27 = int_to_ptr.vmem [resolvable:$true] %s26
      %32 = dma.hbm_to_vmem [thread:$0]  %s1, 512, %s27, [#allocation6], 128, 128, 8
    $region9: #{tpu_custom_call.1} parent=1 // pred_fallthru
      _
    // Predicated region
    $region10: #{tpu_custom_call.1} parent=1 // pred_check
      _
    $region11: #{tpu_custom_call.1} parent=1 // pred_check_branch
      %34 = sbr.rel (0) target = $region13
    $region12: #{tpu_custom_call.1} parent=1 // pred_region
      _
    $region13: #{tpu_custom_call.1} parent=1 // pred_fallthru
      _
    // Predicated region
    $region14: #{tpu_custom_call.1} parent=1 // pred_check
      _
    $region15: #{tpu_custom_call.1} parent=1 // pred_check_branch
      %36 = sbr.rel (0) target = $region17
    $region16: #{tpu_custom_call.1} parent=1 // pred_region
      %37 = dma.done [#allocation3], 128
    $region17: #{tpu_custom_call.1} parent=1 // pred_fallthru
      _
    // Predicated region
    $region18: #{tpu_custom_call.1} parent=1 // pred_check
      _
    $region19: #{tpu_custom_call.1} parent=1 // pred_check_branch
      %39 = sbr.rel (0) target = $region21
    $region20: #{tpu_custom_call.1} parent=1 // pred_region
      %40 = dma.done [#allocation6], 512
    $region21: #{tpu_custom_call.1} parent=1 // pred_fallthru
      _
    %v41 = vld [vmem:[#allocation2] sm:$0xff]
    %v42 = vtanh.pop %v41
    %v43 = vld [vmem:[#allocation5] sm:$0xff]
    %v44 = vld [vmem:[#allocation5 + $0x8] sm:$0xff]
    %v45 = vld [vmem:[#allocation5 + $0x10] sm:$0xff]
    %v46 = vld [vmem:[#allocation5 + $0x18] sm:$0xff]
    %v47 = vld [vmem:[%s2] sm:$0x1]
    %v49 = vlaneseq
    %v50 = vshrl.u32 %v49, 7
    %v51 = vsub.s32 0, %v50
    %v52 = vrot.slane %v47, %v51
    %vm54 = vcmask 261120
    %v56 = vsel %vm54, %v42, 0
    %58 = vmatprep.subr.mxu0 0.0
    %59 = vmatpush1.msra.mxu0 0.0
    %60 = vmatprep.subr.mxu0 0.0
    %61 = vmatpush1.msra.mxu0 0.0
    %62 = vmatprep.subr.mxu0 0.0
    %63 = vmatpush1.msra.mxu0 0.0
    %64 = vmatprep.subr.mxu0 0.0
    %65 = vmatpush1.msra.mxu0 0.0
    %66 = vmatprep.subr.mxu0 0.0
    %67 = vmatpush1.msra.mxu0 0.0
    %68 = vmatprep.subr.mxu0 0.0
    %69 = vmatpush1.msra.mxu0 0.0
    %70 = vmatprep.subr.mxu0 0.0
    %71 = vmatpush1.msra.mxu0 0.0
    %72 = vmatprep.subr.mxu0 0.0
    %73 = vmatpush1.msra.mxu0 0.0
    %74 = vmatprep.subr.mxu0 0.0
    %75 = vmatpush1.msra.mxu0 0.0
    %76 = vmatprep.subr.mxu0 0.0
    %77 = vmatpush1.msra.mxu0 0.0
    %78 = vmatprep.subr.mxu0 0.0
    %79 = vmatpush1.msra.mxu0 0.0
    %80 = vmatprep.subr.mxu0 0.0
    %81 = vmatpush1.msra.mxu0 0.0
    %82 = vmatprep.subr.mxu0 0.0
    %83 = vmatpush1.msra.mxu0 %v46
    %84 = vmatprep.subr.mxu0 0.0
    %85 = vmatpush1.msra.mxu0 %v45
    %86 = vmatprep.subr.mxu0 0.0
    %87 = vmatpush1.msra.mxu0 %v44
    %88 = vmatprep.subr.mxu0 0.0
    %89 = vmatpush1.msra.mxu0 %v43
    %90 = vmatprep.subr.mxu0 0.0
    %91 = vmatpush2.msra.mxu0 0.0
    %92 = vmatprep.subr.mxu0 0.0
    %93 = vmatpush2.msra.mxu0 0.0
    %94 = vmatprep.subr.mxu0 0.0
    %95 = vmatpush2.msra.mxu0 0.0
    %96 = vmatprep.subr.mxu0 0.0
    %97 = vmatpush2.msra.mxu0 0.0
    %98 = vmatprep.subr.mxu0 0.0
    %99 = vmatpush2.msra.mxu0 0.0
    %100 = vmatprep.subr.mxu0 0.0
    %101 = vmatpush2.msra.mxu0 0.0
    %102 = vmatprep.subr.mxu0 0.0
    %103 = vmatpush2.msra.mxu0 0.0
    %104 = vmatprep.subr.mxu0 0.0
    %105 = vmatpush2.msra.mxu0 0.0
    %106 = vmatprep.subr.mxu0 0.0
    %107 = vmatpush2.msra.mxu0 0.0
    %108 = vmatprep.subr.mxu0 0.0
    %109 = vmatpush2.msra.mxu0 0.0
    %110 = vmatprep.subr.mxu0 0.0
    %111 = vmatpush2.msra.mxu0 0.0
    %112 = vmatprep.subr.mxu0 0.0
    %113 = vmatpush2.msra.mxu0 0.0
    %114 = vmatprep.subr.mxu0 0.0
    %115 = vmatpush2.msra.mxu0 0.0
    %116 = vmatprep.subr.mxu0 0.0
    %117 = vmatpush2.msra.mxu0 0.0
    %118 = vmatprep.subr.mxu0 0.0
    %119 = vmatpush2.msra.mxu0 0.0
    %120 = vmatprep.subr.mxu0 0.0
    %121 = vmatpush2.msra.mxu0 0.0
    %122 = vmatprep.mubr.f32.mxu0 0.0
    %123 = vmatmul.mubr.f32.gmra.mxu0 %v56
    %v124 = vpop.f32.mrf.mxu0
    %v125 = vadd.f32 %v52, %v124
    %v126 = vpop.f32.mrf.mxu0
    %127 = vdwg.mxu0
    %128 = vst [vmem:[#allocation7] sm:$0xff] %v125
    // Predicated region
    $region22: #{tpu_custom_call.1} parent=1 // pred_check
      _
    $region23: #{tpu_custom_call.1} parent=1 // pred_check_branch
      %130 = sbr.rel (0) target = $region25
    $region24: #{tpu_custom_call.1} parent=1 // pred_region
      %s132 = ssub.s32 128, 128
      %133 = vsyncadd [#allocation4], %s132
      %s135 = sshll.u32 [#allocation7], 4
      %s136 = int_to_ptr.vmem [resolvable:$true] %s135
      %138 = dma.vmem_to_hbm [thread:$0]  %s136, 128, %s3, [#allocation4]
    $region25: #{tpu_custom_call.1} parent=1 // pred_fallthru
      _
    // Predicated region
    $region26: #{tpu_custom_call.1} parent=1 // pred_check
      _
    $region27: #{tpu_custom_call.1} parent=1 // pred_check_branch
      %140 = sbr.rel (0) target = $region29
    $region28: #{tpu_custom_call.1} parent=1 // pred_region
      %141 = dma.done [#allocation4], 128
    $region29: #{tpu_custom_call.1} parent=1 // pred_fallthru
      _
    %142 = vsyncpa [#allocation3], 1
    %143 = vsyncpa [#allocation6], 1
    %144 = vsyncpa [#allocation4], 1

</llo_original>
